<compile_context>
chip_gen: v6e
topology: v6e:2x2x1
jax: 0.10.0
libtpu: 0.0.40
codegen_flags: <defaults>
</compile_context>

<pallas_src>
import functools
import math

import jax
import jax.numpy as jnp
from jax.experimental import pallas as pl
from jax.experimental.pallas import tpu as pltpu


def _round_up(a, b):
    return (a + b - 1) // b * b


def _is_v5e():
    try:
        kind = jax.devices()[0].device_kind.lower()
        return ("v5 lite" in kind) or ("v5e" in kind) or ("v5lite" in kind)
    except Exception:
        return False


def _vmem_capacity_bytes():
    try:
        cap = getattr(pltpu.get_tpu_info(), "vmem_capacity_bytes", None)
        if cap:
            return int(cap)
    except Exception:
        pass
    return 64 << 20  # conservative default (v7x per-TensorCore VMEM)


def _int_power(x, n):
    """x**n for a static int n >= 1 via square-and-multiply (VPU multiplies only)."""
    acc, base = None, x
    while n > 0:
        if n & 1:
            acc = base if acc is None else acc * base
        n >>= 1
        if n:
            base = base * base
    return acc


def _choose_group(R, L, OW):
    """Pick g (dividing R) so g*L is lane-dense when L itself is not 128-aligned."""
    if L % 128 == 0:
        return 1
    g = 1
    g0 = 128 // math.gcd(L, 128)                # smallest g with (g*L) % 128 == 0
    if g0 * L <= 8192:
        for cand in range(g0, min(R, 2048) + 1, g0):
            if R % cand == 0 and R // cand >= 8:
                g = cand
                break
    if g == 1 and L < 128:
        # fall back: any divisor of R reaching >= 128 lanes (not necessarily aligned)
        for cand in range(-(-128 // L), min(R, 2048) + 1):
            if R % cand == 0 and R // cand >= 8:
                g = cand
                break
    # widen further for output lane density while staying aligned, cheap and divisible
    while ((g * L) % 128 == 0 and g * OW < 128 and 2 * g * L <= 4096
           and R % (2 * g) == 0 and R // (2 * g) >= 64):
        g *= 2
    return g


def _segment_matrix(kH, kW, OW, g, dtype):
    """(g*L, g*OW) 0/1 indicator: column j*OW+ow sums pooling window (j, ow) of a row."""
    L = kH * OW * kW
    idx = jnp.arange(g * L, dtype=jnp.int32)
    col = (idx // L) * OW + ((idx % L) // kW) % OW
    return jax.nn.one_hot(col, g * OW, dtype=dtype)


def _gem_kernel(p_ref, x_ref, seg_ref, o_ref, *, eps, inv_count, p_int, compute_dtype):
    # p_ref : SMEM (1,) f32 learned GeM exponent
    # x_ref : VMEM (tr, gL) tile of grouped pooling rows (native dtype)
    # seg_ref: VMEM (gL, gOW) bf16 0/1 segment-indicator matrix (grid-resident)
    # o_ref : VMEM (tr, gOW) pooled outputs (native dtype)
    p = p_ref[0]
    x = x_ref[...].astype(compute_dtype)
    xc = jnp.maximum(x, jnp.asarray(eps, dtype=compute_dtype))     # clamp(min=eps) > 0
    if p_int is not None:
        xp = _int_power(xc, p_int)                                 # VPU-only power chain
    else:
        xp = jnp.exp(p * jnp.log(xc.astype(jnp.float32)))          # x**p for x > 0 (EUP)

    if o_ref.shape[-1] == 1:
        # single window per row (module default kernel): lane-sum is already cheap
        s = jnp.sum(xp, axis=-1, keepdims=True, dtype=jnp.float32)
    elif xp.dtype == jnp.float32:
        # hi/lo bf16 split: full f32 accuracy (matrix is exactly 0/1) on cheap MXU passes
        hi = xp.astype(jnp.bfloat16)
        lo = (xp - hi.astype(jnp.float32)).astype(jnp.bfloat16)
        s = (jnp.dot(hi, seg_ref[...], preferred_element_type=jnp.float32)
             + jnp.dot(lo, seg_ref[...], preferred_element_type=jnp.float32))
    else:
        # bf16 power chain -> single bf16 MXU pass with f32 accumulation
        s = jnp.dot(xp, seg_ref[...], preferred_element_type=jnp.float32)

    m = s * inv_count                                              # average pooling, > 0
    o_ref[...] = jnp.exp(jnp.log(m) * (1.0 / p)).astype(o_ref.dtype)


def pnt_gem(x, p, *, eps=1e-6, kernel=(4096, 1), p_static=None, max_rows_per_step=None):
    """GeM pooling: avg_pool2d(clamp(x, eps)**p, kernel)**(1/p).

    x: (N, C, H, W) float array; p: (1,)-shaped f32 learned exponent.
    Returns (N, C, H//kH, W//kW) in x.dtype.
    """
    N, C, H, W = x.shape
    kH, kW = kernel
    OH, OW = H // kH, W // kW
    assert OH >= 1 and OW >= 1, "pooling kernel larger than input"
    p = jnp.asarray(p, dtype=jnp.float32).reshape((1,))

    # Integer-exponent fast path: explicit p_static (checked when p is concrete) or
    # auto-detected from a concrete p.
    p_int = int(p_static) if p_static is not None else None
    try:
        p_concrete = float(p[0])
    except Exception:
        p_concrete = None
    if p_concrete is not None:
        if p_int is not None and abs(p_concrete - p_int) > 1e-6 * max(1.0, abs(p_concrete)):
            raise ValueError(f"p_static={p_int} does not match runtime p={p_concrete}")
        if p_int is None and abs(p_concrete - round(p_concrete)) < 1e-6 and 1 <= round(p_concrete) <= 8:
            p_int = int(round(p_concrete))

    # floor behaviour of avg_pool2d: drop rows/cols that do not fill a window.
    if OH * kH != H or OW * kW != W:
        x = x[:, :, :OH * kH, :OW * kW]
    Wc = OW * kW
    R = N * C * OH                   # independent window-row slabs
    L = kH * Wc                      # contiguous elements per slab (holds OW windows)
    count = kH * kW

    g = _choose_group(R, L, OW)      # lane-density grouping (free contiguous reshape)
    Rg, gL, gOW = R // g, g * L, g * OW
    x2 = x.reshape(Rg, gL)

    itemsize = jnp.dtype(x.dtype).itemsize
    sub = max(8, 32 // itemsize)     # dtype-aware sublane tile (8 f32 / 16 bf16 / 32 int8)

    use_bf16 = (x.dtype == jnp.bfloat16 and p_int is not None and not _is_v5e())
    compute_dtype = jnp.bfloat16 if use_bf16 else jnp.float32
    citem = jnp.dtype(compute_dtype).itemsize
    seg = _segment_matrix(kH, kW, OW, g, jnp.bfloat16)   # 0/1 -> exact in bf16

    # ---------------- generation-aware tile sizing ----------------
    vmem_cap = _vmem_capacity_bytes()
    row_lanes = _round_up(gL, 128)
    seg_bytes = _round_up(gL, 16) * _round_up(gOW, 128) * 2
    # double-buffered native-dtype input + ~4 live compute-dtype temporaries per row
    per_row = row_lanes * (2 * itemsize + 4 * citem)
    budget = max(int(vmem_cap * 0.55) - seg_bytes - (2 << 20), 1 << 20)
    tr = max(sub, budget // per_row)
    # keep a reasonably deep grid on big inputs (v7x megacore + per-core pipelining)
    if Rg * gL * itemsize >= (8 << 20):
        tr = min(tr, max(sub, pl.cdiv(Rg, 8)))
    if max_rows_per_step is not None:
        tr = min(tr, int(max_rows_per_step))
    tr = min(tr, Rg)
    if tr < Rg:
        tr = max(sub, (tr // sub) * sub)
    grid = (pl.cdiv(Rg, tr),)
    vmem_limit = max(32 << 20, int(vmem_cap * 0.75))

    kern = functools.partial(
        _gem_kernel, eps=float(eps), inv_count=1.0 / float(count),
        p_int=p_int, compute_dtype=compute_dtype)

    out = pl.pallas_call(
        kern,
        out_shape=jax.ShapeDtypeStruct((Rg, gOW), x.dtype),
        grid=grid,
        in_specs=[
            pl.BlockSpec(memory_space=pltpu.SMEM),          # p (scalar parameter)
            pl.BlockSpec((tr, gL), lambda i: (i, 0)),       # grouped pooling rows
            pl.BlockSpec((gL, gOW), lambda i: (0, 0)),      # segment matrix (resident)
        ],
        out_specs=pl.BlockSpec((tr, gOW), lambda i: (i, 0)),
        compiler_params=pltpu.CompilerParams(
            dimension_semantics=("parallel",),
            vmem_limit_bytes=int(vmem_limit),
        ),
    )(p, x2, seg)

    return out.reshape(N, C, OH, OW)


def _reference_gem(x, p, eps, kernel):
    # pure-JAX reference matching F.avg_pool2d(x.clamp(min=eps).pow(p), kernel).pow(1/p)
    x = x.astype(jnp.float32)
    N, C, H, W = x.shape
    kH, kW = kernel
    OH, OW = H // kH, W // kW
    pf = jnp.asarray(p, jnp.float32).reshape(-1)[0]
    xc = jnp.maximum(x[:, :, :OH * kH, :OW * kW], eps) ** pf
    pooled = xc.reshape(N, C, OH, kH, OW, kW).mean(axis=(3, 5))
    return pooled ** (1.0 / pf)


if __name__ == "__main__":
    key = jax.random.PRNGKey(0)
    k1, k2, k3, k4 = jax.random.split(key, 4)
    eps = 1e-6
    p3 = jnp.ones((1,), jnp.float32) * 3.0      # nn.Parameter(torch.ones(1) * 3)

    def check(y, y_ref, shape, rtol, atol, name):
        assert y.shape == shape, (name, y.shape, shape)
        ok = jnp.allclose(y.astype(jnp.float32), y_ref, rtol=rtol, atol=atol)
        err = float(jnp.max(jnp.abs(y.astype(jnp.float32) - y_ref)))
        assert bool(ok), (name, err)

    # 1) module-default kernel (4096, 1) on a point-cloud style input (OW == 1 path)
    x0 = jax.random.uniform(k1, (2, 4, 4096, 1), jnp.float32, minval=-0.5, maxval=2.0)
    y0 = jax.block_until_ready(pnt_gem(x0, p3, eps=eps, kernel=(4096, 1)))
    check(y0, _reference_gem(x0, p3, eps, (4096, 1)), (2, 4, 1, 1), 1e-4, 1e-5, "default")

    # 2) kW == 1, lane-wide W: MXU segment reduce over (tr, kH*W) slabs
    x1 = jax.random.uniform(k2, (2, 8, 64, 128), jnp.float32, minval=-0.5, maxval=2.0)
    y1_ref = _reference_gem(x1, p3, eps, (16, 1))
    y1 = jax.block_until_ready(pnt_gem(x1, p3, eps=eps, kernel=(16, 1)))
    check(y1, y1_ref, (2, 8, 4, 128), 1e-4, 1e-5, "kW1")
    # forced multi-step grid (exercises pipelining + masked partial last block)
    y1b = jax.block_until_ready(pnt_gem(x1, p3, eps=eps, kernel=(16, 1), max_rows_per_step=24))
    check(y1b, y1_ref, (2, 8, 4, 128), 1e-4, 1e-5, "kW1-tiled")

    # 3) narrow window (W == 1, kH == 16): row grouping restores lane density
    x2 = jax.random.uniform(k3, (2, 8, 64, 1), jnp.float32, minval=-0.5, maxval=2.0)
    y2 = jax.block_until_ready(pnt_gem(x2, p3, eps=eps, kernel=(16, 1)))
    check(y2, _reference_gem(x2, p3, eps, (16, 1)), (2, 8, 4, 1), 1e-4, 1e-5, "grouped")

    # 4) native bf16 ingestion: bf16 VPU power chain + f32 MXU accumulation
    xb = x1.astype(jnp.bfloat16)
    yb = jax.block_until_ready(pnt_gem(xb, p3, eps=eps, kernel=(16, 1), p_static=3))
    assert yb.dtype == jnp.bfloat16
    check(yb, _reference_gem(xb, p3, eps, (16, 1)), (2, 8, 4, 128), 3e-2, 3e-2, "bf16")

    # 5) general (kH, kW) window and non-integer p (per-element EUP path)
    p25 = jnp.ones((1,), jnp.float32) * 2.5
    x3 = jax.random.uniform(k4, (2, 4, 16, 16), jnp.float32, minval=-0.5, maxval=2.0)
    y3 = jax.block_until_ready(pnt_gem(x3, p25, eps=eps, kernel=(4, 4)))
    check(y3, _reference_gem(x3, p25, eps, (4, 4)), (2, 4, 4, 4), 1e-3, 1e-5, "general")

    print("KERNEL_OK")
</pallas_src>

<mosaic_0001>
module attributes {stable_mosaic.version = 11 : i64} {
  func.func @_gem_kernel(%arg0: i32, %arg1: memref<1xf32, #tpu.memory_space<smem>>, %arg2: memref<8x4096xf32, #tpu.memory_space<vmem>>, %arg3: memref<4096x1xbf16, #tpu.memory_space<vmem>>, %arg4: memref<8x1xf32, #tpu.memory_space<vmem>>) attributes {dimension_semantics = [#tpu.dimension_semantics<parallel>], iteration_bounds = array<i64: 1>, scalar_prefetch = 0 : i64, scratch_operands = 0 : i64, tpu.core_type = #tpu.core_type<tc>, window_params = [{transform_indices = @transform_0, window_bounds = array<i64: 1>}, {transform_indices = @transform_1, window_bounds = array<i64: 8, 4096>}, {pipeline_mode = #tpu.pipeline_mode<synchronous>, transform_indices = @transform_2, window_bounds = array<i64: 4096, 1>}, {transform_indices = @transform_3, window_bounds = array<i64: 8, 1>}]} {
    %c0 = arith.constant 0 : index
    %0 = memref.load %arg1[%c0] : memref<1xf32, #tpu.memory_space<smem>>
    %c0_0 = arith.constant 0 : index
    %c0_1 = arith.constant 0 : index
    %1 = vector.load %arg2[%c0_0, %c0_1] : memref<8x4096xf32, #tpu.memory_space<vmem>>, vector<8x4096xf32>
    %cst = arith.constant 9.99999997E-7 : f32
    %2 = vector.broadcast %cst : f32 to vector<8x4096xf32>
    %3 = arith.maximumf %1, %2 : vector<8x4096xf32>
    %4 = arith.mulf %3, %3 : vector<8x4096xf32>
    %5 = arith.mulf %3, %4 : vector<8x4096xf32>
    %cst_2 = arith.constant dense<0.000000e+00> : vector<8xf32>
    %6 = vector.multi_reduction <add>, %5, %cst_2 [1] : vector<8x4096xf32> to vector<8xf32>
    %7 = vector.shape_cast %6 : vector<8xf32> to vector<8x1xf32>
    %cst_3 = arith.constant 2.44140625E-4 : f32
    %8 = vector.broadcast %cst_3 : f32 to vector<8x1xf32>
    %9 = arith.mulf %7, %8 : vector<8x1xf32>
    %10 = math.log %9 : vector<8x1xf32>
    %cst_4 = arith.constant 1.000000e+00 : f32
    %11 = arith.divf %cst_4, %0 : f32
    %12 = vector.broadcast %11 : f32 to vector<8x1xf32>
    %13 = arith.mulf %10, %12 : vector<8x1xf32>
    %14 = math.exp %13 : vector<8x1xf32>
    %c0_5 = arith.constant 0 : index
    %c0_6 = arith.constant 0 : index
    %15 = vector.load %arg4[%c0_5, %c0_6] : memref<8x1xf32, #tpu.memory_space<vmem>>, vector<8x1xf32>
    tpu.vector_store %arg4[%c0_5, %c0_6], %14 {strides = array<i32>} : memref<8x1xf32, #tpu.memory_space<vmem>>, vector<8x1xf32>,
    return
  }
  func.func @transform_0(%arg0: i32) -> i32 {
    %c0_i32 = arith.constant 0 : i32
    %c0_i32_0 = arith.constant 0 : i32
    return %c0_i32 : i32
  }
  func.func @transform_1(%arg0: i32) -> (i32, i32) {
    %c0_i32 = arith.constant 0 : i32
    %c0_i32_0 = arith.constant 0 : i32
    return %arg0, %c0_i32 : i32, i32
  }
  func.func @transform_2(%arg0: i32) -> (i32, i32) {
    %c0_i32 = arith.constant 0 : i32
    %c0_i32_0 = arith.constant 0 : i32
    %c0_i32_1 = arith.constant 0 : i32
    return %c0_i32, %c0_i32_0 : i32, i32
  }
  func.func @transform_3(%arg0: i32) -> (i32, i32) {
    %c0_i32 = arith.constant 0 : i32
    %c0_i32_0 = arith.constant 0 : i32
    return %arg0, %c0_i32 : i32, i32
  }
}

</mosaic_0001>

<llo_original>
// kernel: tpu_custom_call.1
$region0: #{tpu_custom_call.1}
  #allocation0 [shape = 'u32[]', space=smem, size = 0x4, offset = 0x4, fixed_abs, tag = 'smem constant byte address 0x4 - core index']
  #allocation1 [shape = 'u32[144,128]{1,0:T(1,128)}', space=vmem, size = 0x12000, scoped, tag = 'internal scratch']
  #allocation2 [shape = 'f32[1]{0:T(128)S(6)}', space=smem, size = 0x200, scoped, tag = 'scoped memory for tpu_custom_call.1']
  %s0 = inlined_call_operand.<no memory space> [shape: f32[1], index: 0, kind: input, shape index: {}]
  %s1 = inlined_call_operand.vmem [shape: f32[8,4096], index: 1, kind: input, shape index: {}]
  %s2 = inlined_call_operand.vmem [shape: bf16[4096,1], index: 2, kind: input, shape index: {}]
  %s3 = inlined_call_operand.vmem [shape: f32[8,1], index: 3, kind: output, shape index: {}]
  %s4 = sld [smem:[#allocation0]]
  $region22: #{tpu_custom_call.1} parent=0
    _
  %s6 = ssub.s32 1, %s4
  %s7 = scalar_select 0, %s6, %s4
  %8 = sst [smem:[#allocation2]] %s0
  // Predicated region
  $region2: #{tpu_custom_call.1} parent=0 // pred_check
    _
  $region3: #{tpu_custom_call.1} parent=0 // pred_check_branch
    %10 = sbr.rel (0) target = $region5
  $region4: #{tpu_custom_call.1} parent=0 // pred_region
    _
  $region5: #{tpu_custom_call.1} parent=0 // pred_fallthru
    _
  // Predicated region
  $region6: #{tpu_custom_call.1} parent=0 // pred_check
    _
  $region7: #{tpu_custom_call.1} parent=0 // pred_check_branch
    %12 = sbr.rel (0) target = $region9
  $region8: #{tpu_custom_call.1} parent=0 // pred_region
    _
  $region9: #{tpu_custom_call.1} parent=0 // pred_fallthru
    _
  // Predicated region
  $region10: #{tpu_custom_call.1} parent=0 // pred_check
    _
  $region11: #{tpu_custom_call.1} parent=0 // pred_check_branch
    %14 = sbr.rel (0) target = $region13
  $region12: #{tpu_custom_call.1} parent=0 // pred_region
    _
  $region13: #{tpu_custom_call.1} parent=0 // pred_fallthru
    _
  %s15 = sld [smem:[#allocation2]]
  %v16 = vld [vmem:[%s1] sm:$0xff]
  %v17 = vld [vmem:[%s1 + $0x8] sm:$0xff]
  %v18 = vld [vmem:[%s1 + $0x10] sm:$0xff]
  %v19 = vld [vmem:[%s1 + $0x18] sm:$0xff]
  %v20 = vld [vmem:[%s1 + $0x20] sm:$0xff]
  %v21 = vld [vmem:[%s1 + $0x28] sm:$0xff]
  %v22 = vld [vmem:[%s1 + $0x30] sm:$0xff]
  %v23 = vld [vmem:[%s1 + $0x38] sm:$0xff]
  %v24 = vld [vmem:[%s1 + $0x40] sm:$0xff]
  %v25 = vld [vmem:[%s1 + $0x48] sm:$0xff]
  %v26 = vld [vmem:[%s1 + $0x50] sm:$0xff]
  %v27 = vld [vmem:[%s1 + $0x58] sm:$0xff]
  %v28 = vld [vmem:[%s1 + $0x60] sm:$0xff]
  %v29 = vld [vmem:[%s1 + $0x68] sm:$0xff]
  %v30 = vld [vmem:[%s1 + $0x70] sm:$0xff]
  %v31 = vld [vmem:[%s1 + $0x78] sm:$0xff]
  %v32 = vld [vmem:[%s1 + $0x80] sm:$0xff]
  %v33 = vld [vmem:[%s1 + $0x88] sm:$0xff]
  %v34 = vld [vmem:[%s1 + $0x90] sm:$0xff]
  %v35 = vld [vmem:[%s1 + $0x98] sm:$0xff]
  %v36 = vld [vmem:[%s1 + $0xa0] sm:$0xff]
  %v37 = vld [vmem:[%s1 + $0xa8] sm:$0xff]
  %v38 = vld [vmem:[%s1 + $0xb0] sm:$0xff]
  %v39 = vld [vmem:[%s1 + $0xb8] sm:$0xff]
  %v40 = vld [vmem:[%s1 + $0xc0] sm:$0xff]
  %v41 = vld [vmem:[%s1 + $0xc8] sm:$0xff]
  %v42 = vld [vmem:[%s1 + $0xd0] sm:$0xff]
  %v43 = vld [vmem:[%s1 + $0xd8] sm:$0xff]
  %v44 = vld [vmem:[%s1 + $0xe0] sm:$0xff]
  %v45 = vld [vmem:[%s1 + $0xe8] sm:$0xff]
  %v46 = vld [vmem:[%s1 + $0xf0] sm:$0xff]
  %v47 = vld [vmem:[%s1 + $0xf8] sm:$0xff]
  %v48 = vmax.f32 %v16, 1e-06
  %v49 = vmax.f32 %v17, 1e-06
  %v50 = vmax.f32 %v18, 1e-06
  %v51 = vmax.f32 %v19, 1e-06
  %v52 = vmax.f32 %v20, 1e-06
  %v53 = vmax.f32 %v21, 1e-06
  %v54 = vmax.f32 %v22, 1e-06
  %v55 = vmax.f32 %v23, 1e-06
  %v56 = vmax.f32 %v24, 1e-06
  %v57 = vmax.f32 %v25, 1e-06
  %v58 = vmax.f32 %v26, 1e-06
  %v59 = vmax.f32 %v27, 1e-06
  %v60 = vmax.f32 %v28, 1e-06
  %v61 = vmax.f32 %v29, 1e-06
  %v62 = vmax.f32 %v30, 1e-06
  %v63 = vmax.f32 %v31, 1e-06
  %v64 = vmax.f32 %v32, 1e-06
  %v65 = vmax.f32 %v33, 1e-06
  %v66 = vmax.f32 %v34, 1e-06
  %v67 = vmax.f32 %v35, 1e-06
  %v68 = vmax.f32 %v36, 1e-06
  %v69 = vmax.f32 %v37, 1e-06
  %v70 = vmax.f32 %v38, 1e-06
  %v71 = vmax.f32 %v39, 1e-06
  %v72 = vmax.f32 %v40, 1e-06
  %v73 = vmax.f32 %v41, 1e-06
  %v74 = vmax.f32 %v42, 1e-06
  %v75 = vmax.f32 %v43, 1e-06
  %v76 = vmax.f32 %v44, 1e-06
  %v77 = vmax.f32 %v45, 1e-06
  %v78 = vmax.f32 %v46, 1e-06
  %v79 = vmax.f32 %v47, 1e-06
  %v80 = vmul.f32 %v48, %v48
  %v81 = vmul.f32 %v49, %v49
  %v82 = vmul.f32 %v50, %v50
  %v83 = vmul.f32 %v51, %v51
  %v84 = vmul.f32 %v52, %v52
  %v85 = vmul.f32 %v53, %v53
  %v86 = vmul.f32 %v54, %v54
  %v87 = vmul.f32 %v55, %v55
  %v88 = vmul.f32 %v56, %v56
  %v89 = vmul.f32 %v57, %v57
  %v90 = vmul.f32 %v58, %v58
  %v91 = vmul.f32 %v59, %v59
  %v92 = vmul.f32 %v60, %v60
  %v93 = vmul.f32 %v61, %v61
  %v94 = vmul.f32 %v62, %v62
  %v95 = vmul.f32 %v63, %v63
  %v96 = vmul.f32 %v64, %v64
  %v97 = vmul.f32 %v65, %v65
  %v98 = vmul.f32 %v66, %v66
  %v99 = vmul.f32 %v67, %v67
  %v100 = vmul.f32 %v68, %v68
  %v101 = vmul.f32 %v69, %v69
  %v102 = vmul.f32 %v70, %v70
  %v103 = vmul.f32 %v71, %v71
  %v104 = vmul.f32 %v72, %v72
  %v105 = vmul.f32 %v73, %v73
  %v106 = vmul.f32 %v74, %v74
  %v107 = vmul.f32 %v75, %v75
  %v108 = vmul.f32 %v76, %v76
  %v109 = vmul.f32 %v77, %v77
  %v110 = vmul.f32 %v78, %v78
  %v111 = vmul.f32 %v79, %v79
  %v112 = vmul.f32 %v48, %v80
  %v113 = vmul.f32 %v49, %v81
  %v114 = vmul.f32 %v50, %v82
  %v115 = vmul.f32 %v51, %v83
  %v116 = vmul.f32 %v52, %v84
  %v117 = vmul.f32 %v53, %v85
  %v118 = vmul.f32 %v54, %v86
  %v119 = vmul.f32 %v55, %v87
  %v120 = vmul.f32 %v56, %v88
  %v121 = vmul.f32 %v57, %v89
  %v122 = vmul.f32 %v58, %v90
  %v123 = vmul.f32 %v59, %v91
  %v124 = vmul.f32 %v60, %v92
  %v125 = vmul.f32 %v61, %v93
  %v126 = vmul.f32 %v62, %v94
  %v127 = vmul.f32 %v63, %v95
  %v128 = vmul.f32 %v64, %v96
  %v129 = vmul.f32 %v65, %v97
  %v130 = vmul.f32 %v66, %v98
  %v131 = vmul.f32 %v67, %v99
  %v132 = vmul.f32 %v68, %v100
  %v133 = vmul.f32 %v69, %v101
  %v134 = vmul.f32 %v70, %v102
  %v135 = vmul.f32 %v71, %v103
  %v136 = vmul.f32 %v72, %v104
  %v137 = vmul.f32 %v73, %v105
  %v138 = vmul.f32 %v74, %v106
  %v139 = vmul.f32 %v75, %v107
  %v140 = vmul.f32 %v76, %v108
  %v141 = vmul.f32 %v77, %v109
  %v142 = vmul.f32 %v78, %v110
  %v143 = vmul.f32 %v79, %v111
  %v144 = vadd.f32 %v112, %v113
  %v145 = vadd.f32 %v144, %v114
  %v146 = vadd.f32 %v145, %v115
  %v147 = vadd.f32 %v146, %v116
  %v148 = vadd.f32 %v147, %v117
  %v149 = vadd.f32 %v148, %v118
  %v150 = vadd.f32 %v149, %v119
  %v151 = vadd.f32 %v150, %v120
  %v152 = vadd.f32 %v151, %v121
  %v153 = vadd.f32 %v152, %v122
  %v154 = vadd.f32 %v153, %v123
  %v155 = vadd.f32 %v154, %v124
  %v156 = vadd.f32 %v155, %v125
  %v157 = vadd.f32 %v156, %v126
  %v158 = vadd.f32 %v157, %v127
  %v159 = vadd.f32 %v158, %v128
  %v160 = vadd.f32 %v159, %v129
  %v161 = vadd.f32 %v160, %v130
  %v162 = vadd.f32 %v161, %v131
  %v163 = vadd.f32 %v162, %v132
  %v164 = vadd.f32 %v163, %v133
  %v165 = vadd.f32 %v164, %v134
  %v166 = vadd.f32 %v165, %v135
  %v167 = vadd.f32 %v166, %v136
  %v168 = vadd.f32 %v167, %v137
  %v169 = vadd.f32 %v168, %v138
  %v170 = vadd.f32 %v169, %v139
  %v171 = vadd.f32 %v170, %v140
  %v172 = vadd.f32 %v171, %v141
  %v173 = vadd.f32 %v172, %v142
  %v174 = vadd.f32 %v173, %v143
  %175 = vadd.xlane.f32.xlu0 %v174
  %v176 = vpop.xlane.xlu0 %175
  %v177 = vmul.f32 %v176, 0.00024414063
  %v178 = vlog2.pop %v177
  %v179 = vmul.f32 %v178, 0.6931472
  %v180 = vstv %s15
  %v181 = vrcp.pop %v180
  %s182 = vtos %v181
  %v183 = vstv %s182
  %v184 = vmul.f32 %v179, %v183
  %v185 = vmul.f32 %v184, 1.442695
  %v186 = vpow.pop %v185
  %vm187 = vcmask 7168
  %188 = vst.msk [vmem:[%s3] sm:$0xff] %vm187, %v186
  // Predicated region
  $region14: #{tpu_custom_call.1} parent=0 // pred_check
    _
  $region15: #{tpu_custom_call.1} parent=0 // pred_check_branch
    %190 = sbr.rel (0) target = $region17
  $region16: #{tpu_custom_call.1} parent=0 // pred_region
    _
  $region17: #{tpu_custom_call.1} parent=0 // pred_fallthru
    _
  // Predicated region
  $region18: #{tpu_custom_call.1} parent=0 // pred_check
    _
  $region19: #{tpu_custom_call.1} parent=0 // pred_check_branch
    %192 = sbr.rel (0) target = $region21
  $region20: #{tpu_custom_call.1} parent=0 // pred_region
    _
  $region21: #{tpu_custom_call.1} parent=0 // pred_fallthru
    _

</llo_original>
